<compile_context>
chip_gen: v7x
topology: tpu7x:2x2x1
jax: 0.10.0
libtpu: 0.0.40
codegen_flags: <defaults>
</compile_context>

<pallas_src>
import functools
import math

import jax
import jax.numpy as jnp
from jax.experimental import pallas as pl
from jax.experimental.pallas import tpu as pltpu


def _bn_relu_conv_kernel(x_ref, scale_ref, shift_ref, w_ref, b_ref, o_ref,
                         apad_ref, *, H, W, Cin_pad, Cout_pad, K, pad):
    """One batch element per grid step: BN(eval) + ReLU + 'same' KxK conv.

    x_ref:     (1, Cin_pad, H*W)  f32   input block, spatial on lanes
    scale_ref: (Cin_pad, 1)       f32   gamma / sqrt(var + eps)   (0 on pad rows)
    shift_ref: (Cin_pad, 1)       f32   beta - mean * scale       (0 on pad rows)
    w_ref:     (K*K, Cout_pad, Cin_pad) bf16  per-tap weight matrices
    b_ref:     (Cout_pad, 1)      f32   conv bias
    o_ref:     (1, Cout_pad, H*W) f32   output block, spatial on lanes
    apad_ref:  (Cin_pad, H*W + (K-1)*(W+1)) f32  flat H-padded activations
    """
    HW = H * W
    base = pad * (W + 1)                    # offset of a[c, 0, 0] in the flat buffer
    padlen = HW + (K - 1) * (W + 1)

    # BatchNorm (eval-mode affine) + ReLU in f32 (v5e has no bf16 VPU).
    a = jnp.maximum(x_ref[0] * scale_ref[...] + shift_ref[...], 0.0)

    # Flat H-padded activation buffer: the zero borders supply the top/bottom
    # 'same' padding.  Only the (tiny) borders are zeroed, and they are zeroed
    # every step: with dimension_semantics=("parallel",) grid steps may be
    # sharded across TensorCores, so a pl.when(program_id == 0) guard could
    # leave the other core's scratch uninitialized.
    apad_ref[:, 0:base] = jnp.zeros((Cin_pad, base), apad_ref.dtype)
    apad_ref[:, base + HW:padlen] = jnp.zeros((Cin_pad, padlen - base - HW),
                                              apad_ref.dtype)
    apad_ref[:, base:base + HW] = a

    # Horizontal 'same' validity masks: only taps with kw != pad can wrap
    # around an image row and need masking.  Use jnp.where (not multiply-by-0)
    # so NaN/Inf from a neighboring row cannot leak in.
    xpos = jax.lax.broadcasted_iota(jnp.int32, (1, HW), 1) % W
    masks = []
    for kw in range(K):
        lo = pad - kw
        hi = W - 1 + pad - kw
        if lo <= 0 and hi >= W - 1:
            masks.append(None)                                   # interior tap
        else:
            masks.append(jnp.logical_and(xpos >= lo, xpos <= hi))

    # Per-tap MXU accumulation: acc += (Cout, Cin) @ (Cin, H*W)_tap.
    # Every tap is a contiguous lane-slice of the flat padded buffer; the small
    # per-step accumulator (Cout_pad, HW) lives in registers and is stored once.
    # TODO(synk): when W is a multiple of 128 at real sizes, keep the kh shift
    # lane-aligned and express the kw shift with pltpu.roll (XLU slot) instead
    # of an unaligned lane slice.
    acc = jnp.zeros((Cout_pad, HW), jnp.float32)
    for kh in range(K):
        for kw in range(K):
            s = kh * W + kw
            piece = apad_ref[:, s:s + HW]
            if masks[kw] is not None:
                piece = jnp.where(masks[kw], piece, jnp.zeros_like(piece))
            acc = acc + jnp.dot(w_ref[kh * K + kw],
                                piece.astype(jnp.bfloat16),
                                preferred_element_type=jnp.float32)

    # Bias + single lane-dense store (last dim H*W is a multiple of 128).
    o_ref[0] = (acc + b_ref[...]).astype(o_ref.dtype)


def bn_relu_conv(x_nchw, bn_gamma, bn_beta, bn_mean, bn_var,
                 conv_w, conv_b, *, eps=1e-3):
    """NCHW in, NCHW out.  conv_w is OIHW (PyTorch).  eps=1e-3 per the module.

    TODO(synk): dropout > 0 and train-mode BN batch statistics are not
    implemented (the exercised module config is dropout=0 / eval-mode BN).
    """
    N, Cin, H, W = x_nchw.shape
    Cout, _, KH, KW = conv_w.shape
    assert KH == KW and KH % 2 == 1, "square, odd 'same' kernels only"
    K = KH
    pad = (K - 1) // 2
    HW = H * W
    assert HW % 128 == 0, "H*W must be a multiple of 128 (lane-dense layout)"

    # Pad channels up to the f32 sublane tile so vregs are fully populated and
    # channel-dim stores are unmasked.  Padded rows/cols are exact zeros on both
    # the activation and weight side, so they contribute nothing.
    Cin_pad = ((Cin + 7) // 8) * 8
    Cout_pad = ((Cout + 7) // 8) * 8
    padlen = HW + (K - 1) * (W + 1)

    # --- wrapper glue (plain JAX): reshapes + BN folding, no HW transposes ---
    x = x_nchw.reshape(N, Cin, HW).astype(jnp.float32)
    x = jnp.pad(x, ((0, 0), (0, Cin_pad - Cin), (0, 0)))

    inv = bn_gamma / jnp.sqrt(bn_var + eps)
    scale = jnp.zeros((Cin_pad, 1), jnp.float32).at[:Cin, 0].set(
        inv.astype(jnp.float32))
    shift = jnp.zeros((Cin_pad, 1), jnp.float32).at[:Cin, 0].set(
        (bn_beta - bn_mean * inv).astype(jnp.float32))

    # (Cout, Cin, KH, KW) -> (K*K, Cout_pad, Cin_pad) bf16 per-tap matrices.
    w = jnp.transpose(conv_w, (2, 3, 0, 1)).reshape(K * K, Cout, Cin)
    w = jnp.pad(w, ((0, 0), (0, Cout_pad - Cout), (0, Cin_pad - Cin)))
    w = w.astype(jnp.bfloat16)
    b = jnp.zeros((Cout_pad, 1), jnp.float32).at[:Cout, 0].set(
        conv_b.astype(jnp.float32))

    kern = functools.partial(_bn_relu_conv_kernel, H=H, W=W, Cin_pad=Cin_pad,
                             Cout_pad=Cout_pad, K=K, pad=pad)

    # Grid over the batch: BlockSpec double-buffers the per-step x/o DMA so the
    # next batch element's transfer overlaps compute; "parallel" lets v7x shard
    # grid steps across its 2 TensorCores (no effect on v5e/v6e).
    # TODO(synk): add a second grid axis tiling H*W once images are large enough
    # that a (Cin_pad, HW) block no longer fits comfortably in VMEM.
    out = pl.pallas_call(
        kern,
        out_shape=jax.ShapeDtypeStruct((N, Cout_pad, HW), jnp.float32),
        grid_spec=pltpu.PrefetchScalarGridSpec(
            num_scalar_prefetch=0,
            grid=(N,),
            in_specs=[
                pl.BlockSpec((1, Cin_pad, HW), lambda n: (n, 0, 0)),
                pl.BlockSpec((Cin_pad, 1), lambda n: (0, 0)),
                pl.BlockSpec((Cin_pad, 1), lambda n: (0, 0)),
                pl.BlockSpec((K * K, Cout_pad, Cin_pad), lambda n: (0, 0, 0)),
                pl.BlockSpec((Cout_pad, 1), lambda n: (0, 0)),
            ],
            out_specs=pl.BlockSpec((1, Cout_pad, HW), lambda n: (n, 0, 0)),
            scratch_shapes=[
                pltpu.VMEM((Cin_pad, padlen), jnp.float32),  # flat padded act
            ],
        ),
        compiler_params=pltpu.CompilerParams(
            dimension_semantics=("parallel",),
            # Explicit VMEM budget: tiny here, and safely under the 32 MiB
            # scoped default / v7x's 64 MiB physical.  Re-derive when tiling
            # real shapes (2x input block + 2x output block + apad + weights).
            vmem_limit_bytes=32 * 1024 * 1024,
        ),
    )(x, scale, shift, w, b)

    return out[:, :Cout, :].reshape(N, Cout, H, W)               # NCHW


def _reference(x_nchw, gamma, beta, mean, var, w, b, eps=1e-3):
    pad = (w.shape[-1] - 1) // 2
    inv = (gamma / jnp.sqrt(var + eps))[None, :, None, None]
    a = jnp.maximum((x_nchw - mean[None, :, None, None]) * inv
                    + beta[None, :, None, None], 0.0)
    out = jax.lax.conv_general_dilated(
        a, w, window_strides=(1, 1), padding=((pad, pad), (pad, pad)),
        dimension_numbers=("NCHW", "OIHW", "NCHW"))
    return out + b[None, :, None, None]


if __name__ == "__main__":
    # Module config: BnReluConv(input_channels=4, n_filters=8, filter_size=3,
    #                           dropout=0.0, bias=True, dilation=1, stride=(1,1))
    N, Cin, H, W = 2, 4, 16, 16
    Cout, K = 8, 3

    key = jax.random.PRNGKey(0)
    kx, kwk = jax.random.split(key)
    x = jax.random.normal(kx, (N, Cin, H, W), dtype=jnp.float32)

    # BatchNorm2d params as set in __init__: weight=1, bias=0; default running stats.
    bn_gamma = jnp.ones((Cin,), jnp.float32)
    bn_beta = jnp.zeros((Cin,), jnp.float32)
    bn_mean = jnp.zeros((Cin,), jnp.float32)
    bn_var = jnp.ones((Cin,), jnp.float32)

    # Conv2d params: kaiming_uniform(weight) (fan_in, relu gain), bias zeroed.
    fan_in = Cin * K * K
    bound = math.sqrt(3.0) * math.sqrt(2.0) / math.sqrt(fan_in)
    conv_w = jax.random.uniform(kwk, (Cout, Cin, K, K), jnp.float32,
                                minval=-bound, maxval=bound)
    conv_b = jnp.zeros((Cout,), jnp.float32)

    out = bn_relu_conv(x, bn_gamma, bn_beta, bn_mean, bn_var, conv_w, conv_b)
    out = jax.block_until_ready(out)

    ref = _reference(x, bn_gamma, bn_beta, bn_mean, bn_var, conv_w, conv_b)
    assert out.shape == (N, Cout, H, W), out.shape
    # Tolerance loosened for bf16 MXU operands (accumulation is f32); the f32
    # reference differs only by the bf16 input quantization of w and the acts.
    assert jnp.allclose(out, ref, atol=5e-2, rtol=5e-2), float(
        jnp.max(jnp.abs(out - ref)))

    print("KERNEL_OK")
</pallas_src>

<mosaic_0001>
module attributes {stable_mosaic.version = 11 : i64} {
  func.func @_bn_relu_conv_kernel(%arg0: i32, %arg1: memref<1x8x256xf32, #tpu.memory_space<vmem>>, %arg2: memref<8x1xf32, #tpu.memory_space<vmem>>, %arg3: memref<8x1xf32, #tpu.memory_space<vmem>>, %arg4: memref<9x8x8xbf16, #tpu.memory_space<vmem>>, %arg5: memref<8x1xf32, #tpu.memory_space<vmem>>, %arg6: memref<1x8x256xf32, #tpu.memory_space<vmem>>, %arg7: memref<8x290xf32, #tpu.memory_space<vmem>>) attributes {dimension_semantics = [#tpu.dimension_semantics<parallel>], iteration_bounds = array<i64: 2>, scalar_prefetch = 0 : i64, scratch_operands = 1 : i64, tpu.core_type = #tpu.core_type<tc>, window_params = [{transform_indices = @transform_0, window_bounds = array<i64: 1, 8, 256>}, {pipeline_mode = #tpu.pipeline_mode<synchronous>, transform_indices = @transform_1, window_bounds = array<i64: 8, 1>}, {pipeline_mode = #tpu.pipeline_mode<synchronous>, transform_indices = @transform_2, window_bounds = array<i64: 8, 1>}, {pipeline_mode = #tpu.pipeline_mode<synchronous>, transform_indices = @transform_3, window_bounds = array<i64: 9, 8, 8>}, {pipeline_mode = #tpu.pipeline_mode<synchronous>, transform_indices = @transform_4, window_bounds = array<i64: 8, 1>}, {transform_indices = @transform_5, window_bounds = array<i64: 1, 8, 256>}]} {
    %c0 = arith.constant 0 : index
    %c0_0 = arith.constant 0 : index
    %c0_1 = arith.constant 0 : index
    %0 = vector.load %arg1[%c0, %c0_0, %c0_1] : memref<1x8x256xf32, #tpu.memory_space<vmem>>, vector<1x8x256xf32>
    %1 = vector.shape_cast %0 : vector<1x8x256xf32> to vector<8x256xf32>
    %c0_2 = arith.constant 0 : index
    %c0_3 = arith.constant 0 : index
    %2 = vector.load %arg2[%c0_2, %c0_3] : memref<8x1xf32, #tpu.memory_space<vmem>>, vector<8x1xf32>
    %3 = vector.broadcast %2 : vector<8x1xf32> to vector<8x256xf32>
    %4 = arith.mulf %1, %3 : vector<8x256xf32>
    %c0_4 = arith.constant 0 : index
    %c0_5 = arith.constant 0 : index
    %5 = vector.load %arg3[%c0_4, %c0_5] : memref<8x1xf32, #tpu.memory_space<vmem>>, vector<8x1xf32>
    %6 = vector.broadcast %5 : vector<8x1xf32> to vector<8x256xf32>
    %7 = arith.addf %4, %6 : vector<8x256xf32>
    %cst = arith.constant 0.000000e+00 : f32
    %8 = vector.broadcast %cst : f32 to vector<8x256xf32>
    %9 = arith.maximumf %7, %8 : vector<8x256xf32>
    %cst_6 = arith.constant 0.000000e+00 : f32
    %10 = vector.broadcast %cst_6 : f32 to vector<8x17xf32>
    %c0_7 = arith.constant 0 : index
    %c0_8 = arith.constant 0 : index
    %11 = vector.load %arg7[%c0_7, %c0_8] : memref<8x290xf32, #tpu.memory_space<vmem>>, vector<8x17xf32>
    tpu.vector_store %arg7[%c0_7, %c0_8], %10 {strides = array<i32>} : memref<8x290xf32, #tpu.memory_space<vmem>>, vector<8x17xf32>,
    %cst_9 = arith.constant 0.000000e+00 : f32
    %12 = vector.broadcast %cst_9 : f32 to vector<8x17xf32>
    %c0_10 = arith.constant 0 : index
    %c273 = arith.constant 273 : index
    %13 = vector.load %arg7[%c0_10, %c273] : memref<8x290xf32, #tpu.memory_space<vmem>>, vector<8x17xf32>
    tpu.vector_store %arg7[%c0_10, %c273], %12 {strides = array<i32>} : memref<8x290xf32, #tpu.memory_space<vmem>>, vector<8x17xf32>,
    %c0_11 = arith.constant 0 : index
    %c17 = arith.constant 17 : index
    %14 = vector.load %arg7[%c0_11, %c17] : memref<8x290xf32, #tpu.memory_space<vmem>>, vector<8x256xf32>
    tpu.vector_store %arg7[%c0_11, %c17], %9 {strides = array<i32>} : memref<8x290xf32, #tpu.memory_space<vmem>>, vector<8x256xf32>,
    %15 = tpu.iota {dimensions = array<i32: 1>} : vector<1x256xi32>
    %c16_i32 = arith.constant 16 : i32
    %c0_i32 = arith.constant 0 : i32
    %16 = arith.cmpi eq, %c16_i32, %c0_i32 : i32
    %c1_i32 = arith.constant 1 : i32
    %17 = arith.select %16, %c1_i32, %c16_i32 : i32
    %18 = vector.broadcast %17 : i32 to vector<1x256xi32>
    %19 = arith.remsi %15, %18 : vector<1x256xi32>
    %c0_i32_12 = arith.constant 0 : i32
    %20 = vector.broadcast %c0_i32_12 : i32 to vector<1x256xi32>
    %21 = arith.cmpi ne, %19, %20 : vector<1x256xi32>
    %c0_i32_13 = arith.constant 0 : i32
    %22 = vector.broadcast %c0_i32_13 : i32 to vector<1x256xi32>
    %23 = arith.cmpi slt, %19, %22 : vector<1x256xi32>
    %c0_i32_14 = arith.constant 0 : i32
    %24 = arith.cmpi slt, %17, %c0_i32_14 : i32
    %25 = vector.broadcast %24 : i1 to vector<1x256xi1>
    %26 = vector.broadcast %25 : vector<1x256xi1> to vector<1x256xi1>
    %27 = arith.xori %23, %26 : vector<1x256xi1>
    %28 = arith.andi %27, %21 : vector<1x256xi1>
    %29 = vector.broadcast %17 : i32 to vector<1x256xi32>
    %30 = arith.addi %19, %29 : vector<1x256xi32>
    %31 = arith.select %28, %30, %19 : vector<1x256xi1>, vector<1x256xi32>
    %c1_i32_15 = arith.constant 1 : i32
    %32 = vector.broadcast %c1_i32_15 : i32 to vector<1x256xi32>
    %33 = arith.cmpi sge, %31, %32 : vector<1x256xi32>
    %c16_i32_16 = arith.constant 16 : i32
    %34 = vector.broadcast %c16_i32_16 : i32 to vector<1x256xi32>
    %35 = arith.cmpi sle, %31, %34 : vector<1x256xi32>
    %36 = arith.andi %33, %35 : vector<1x256xi1>
    %c-1_i32 = arith.constant -1 : i32
    %37 = vector.broadcast %c-1_i32 : i32 to vector<1x256xi32>
    %38 = arith.cmpi sge, %31, %37 : vector<1x256xi32>
    %c14_i32 = arith.constant 14 : i32
    %39 = vector.broadcast %c14_i32 : i32 to vector<1x256xi32>
    %40 = arith.cmpi sle, %31, %39 : vector<1x256xi32>
    %41 = arith.andi %38, %40 : vector<1x256xi1>
    %cst_17 = arith.constant 0.000000e+00 : f32
    %42 = vector.broadcast %cst_17 : f32 to vector<8x256xf32>
    %c0_18 = arith.constant 0 : index
    %c0_19 = arith.constant 0 : index
    %43 = vector.load %arg7[%c0_18, %c0_19] : memref<8x290xf32, #tpu.memory_space<vmem>>, vector<8x256xf32>
    %cst_20 = arith.constant 0.000000e+00 : f32
    %44 = vector.broadcast %cst_20 : f32 to vector<8x256xf32>
    %45 = vector.shape_cast %36 : vector<1x256xi1> to vector<1x256xi1>
    %46 = vector.broadcast %45 : vector<1x256xi1> to vector<8x256xi1>
    %47 = arith.select %46, %43, %44 : vector<8x256xi1>, vector<8x256xf32>
    %c0_21 = arith.constant 0 : index
    %c0_22 = arith.constant 0 : index
    %c0_23 = arith.constant 0 : index
    %48 = vector.load %arg4[%c0_21, %c0_22, %c0_23] : memref<9x8x8xbf16, #tpu.memory_space<vmem>>, vector<1x8x8xbf16>
    %49 = vector.shape_cast %48 : vector<1x8x8xbf16> to vector<8x8xbf16>
    %50 = arith.truncf %47 : vector<8x256xf32> to vector<8x256xbf16>
    %cst_24 = arith.constant dense<0.000000e+00> : vector<8x256xf32>
    %51 = tpu.matmul %49, %50, %cst_24 {dimension_numbers = #tpu.dot_dimension_numbers<[1], [0], [0], [1], [0, 0, 1, 1], [], []>} : vector<8x8xbf16>, vector<8x256xbf16>, vector<8x256xf32> -> vector<8x256xf32>
    %52 = arith.addf %42, %51 : vector<8x256xf32>
    %c0_25 = arith.constant 0 : index
    %c1 = arith.constant 1 : index
    %53 = vector.load %arg7[%c0_25, %c1] : memref<8x290xf32, #tpu.memory_space<vmem>>, vector<8x256xf32>
    %c1_26 = arith.constant 1 : index
    %c0_27 = arith.constant 0 : index
    %c0_28 = arith.constant 0 : index
    %54 = vector.load %arg4[%c1_26, %c0_27, %c0_28] : memref<9x8x8xbf16, #tpu.memory_space<vmem>>, vector<1x8x8xbf16>
    %55 = vector.shape_cast %54 : vector<1x8x8xbf16> to vector<8x8xbf16>
    %56 = arith.truncf %53 : vector<8x256xf32> to vector<8x256xbf16>
    %cst_29 = arith.constant dense<0.000000e+00> : vector<8x256xf32>
    %57 = tpu.matmul %55, %56, %cst_29 {dimension_numbers = #tpu.dot_dimension_numbers<[1], [0], [0], [1], [0, 0, 1, 1], [], []>} : vector<8x8xbf16>, vector<8x256xbf16>, vector<8x256xf32> -> vector<8x256xf32>
    %58 = arith.addf %52, %57 : vector<8x256xf32>
    %c0_30 = arith.constant 0 : index
    %c2 = arith.constant 2 : index
    %59 = vector.load %arg7[%c0_30, %c2] : memref<8x290xf32, #tpu.memory_space<vmem>>, vector<8x256xf32>
    %cst_31 = arith.constant 0.000000e+00 : f32
    %60 = vector.broadcast %cst_31 : f32 to vector<8x256xf32>
    %61 = vector.shape_cast %41 : vector<1x256xi1> to vector<1x256xi1>
    %62 = vector.broadcast %61 : vector<1x256xi1> to vector<8x256xi1>
    %63 = arith.select %62, %59, %60 : vector<8x256xi1>, vector<8x256xf32>
    %c2_32 = arith.constant 2 : index
    %c0_33 = arith.constant 0 : index
    %c0_34 = arith.constant 0 : index
    %64 = vector.load %arg4[%c2_32, %c0_33, %c0_34] : memref<9x8x8xbf16, #tpu.memory_space<vmem>>, vector<1x8x8xbf16>
    %65 = vector.shape_cast %64 : vector<1x8x8xbf16> to vector<8x8xbf16>
    %66 = arith.truncf %63 : vector<8x256xf32> to vector<8x256xbf16>
    %cst_35 = arith.constant dense<0.000000e+00> : vector<8x256xf32>
    %67 = tpu.matmul %65, %66, %cst_35 {dimension_numbers = #tpu.dot_dimension_numbers<[1], [0], [0], [1], [0, 0, 1, 1], [], []>} : vector<8x8xbf16>, vector<8x256xbf16>, vector<8x256xf32> -> vector<8x256xf32>
    %68 = arith.addf %58, %67 : vector<8x256xf32>
    %c0_36 = arith.constant 0 : index
    %c16 = arith.constant 16 : index
    %69 = vector.load %arg7[%c0_36, %c16] : memref<8x290xf32, #tpu.memory_space<vmem>>, vector<8x256xf32>
    %cst_37 = arith.constant 0.000000e+00 : f32
    %70 = vector.broadcast %cst_37 : f32 to vector<8x256xf32>
    %71 = vector.shape_cast %36 : vector<1x256xi1> to vector<1x256xi1>
    %72 = vector.broadcast %71 : vector<1x256xi1> to vector<8x256xi1>
    %73 = arith.select %72, %69, %70 : vector<8x256xi1>, vector<8x256xf32>
    %c3 = arith.constant 3 : index
    %c0_38 = arith.constant 0 : index
    %c0_39 = arith.constant 0 : index
    %74 = vector.load %arg4[%c3, %c0_38, %c0_39] : memref<9x8x8xbf16, #tpu.memory_space<vmem>>, vector<1x8x8xbf16>
    %75 = vector.shape_cast %74 : vector<1x8x8xbf16> to vector<8x8xbf16>
    %76 = arith.truncf %73 : vector<8x256xf32> to vector<8x256xbf16>
    %cst_40 = arith.constant dense<0.000000e+00> : vector<8x256xf32>
    %77 = tpu.matmul %75, %76, %cst_40 {dimension_numbers = #tpu.dot_dimension_numbers<[1], [0], [0], [1], [0, 0, 1, 1], [], []>} : vector<8x8xbf16>, vector<8x256xbf16>, vector<8x256xf32> -> vector<8x256xf32>
    %78 = arith.addf %68, %77 : vector<8x256xf32>
    %c0_41 = arith.constant 0 : index
    %c17_42 = arith.constant 17 : index
    %79 = vector.load %arg7[%c0_41, %c17_42] : memref<8x290xf32, #tpu.memory_space<vmem>>, vector<8x256xf32>
    %c4 = arith.constant 4 : index
    %c0_43 = arith.constant 0 : index
    %c0_44 = arith.constant 0 : index
    %80 = vector.load %arg4[%c4, %c0_43, %c0_44] : memref<9x8x8xbf16, #tpu.memory_space<vmem>>, vector<1x8x8xbf16>
    %81 = vector.shape_cast %80 : vector<1x8x8xbf16> to vector<8x8xbf16>
    %82 = arith.truncf %79 : vector<8x256xf32> to vector<8x256xbf16>
    %cst_45 = arith.constant dense<0.000000e+00> : vector<8x256xf32>
    %83 = tpu.matmul %81, %82, %cst_45 {dimension_numbers = #tpu.dot_dimension_numbers<[1], [0], [0], [1], [0, 0, 1, 1], [], []>} : vector<8x8xbf16>, vector<8x256xbf16>, vector<8x256xf32> -> vector<8x256xf32>
    %84 = arith.addf %78, %83 : vector<8x256xf32>
    %c0_46 = arith.constant 0 : index
    %c18 = arith.constant 18 : index
    %85 = vector.load %arg7[%c0_46, %c18] : memref<8x290xf32, #tpu.memory_space<vmem>>, vector<8x256xf32>
    %cst_47 = arith.constant 0.000000e+00 : f32
    %86 = vector.broadcast %cst_47 : f32 to vector<8x256xf32>
    %87 = vector.shape_cast %41 : vector<1x256xi1> to vector<1x256xi1>
    %88 = vector.broadcast %87 : vector<1x256xi1> to vector<8x256xi1>
    %89 = arith.select %88, %85, %86 : vector<8x256xi1>, vector<8x256xf32>
    %c5 = arith.constant 5 : index
    %c0_48 = arith.constant 0 : index
    %c0_49 = arith.constant 0 : index
    %90 = vector.load %arg4[%c5, %c0_48, %c0_49] : memref<9x8x8xbf16, #tpu.memory_space<vmem>>, vector<1x8x8xbf16>
    %91 = vector.shape_cast %90 : vector<1x8x8xbf16> to vector<8x8xbf16>
    %92 = arith.truncf %89 : vector<8x256xf32> to vector<8x256xbf16>
    %cst_50 = arith.constant dense<0.000000e+00> : vector<8x256xf32>
    %93 = tpu.matmul %91, %92, %cst_50 {dimension_numbers = #tpu.dot_dimension_numbers<[1], [0], [0], [1], [0, 0, 1, 1], [], []>} : vector<8x8xbf16>, vector<8x256xbf16>, vector<8x256xf32> -> vector<8x256xf32>
    %94 = arith.addf %84, %93 : vector<8x256xf32>
    %c0_51 = arith.constant 0 : index
    %c32 = arith.constant 32 : index
    %95 = vector.load %arg7[%c0_51, %c32] : memref<8x290xf32, #tpu.memory_space<vmem>>, vector<8x256xf32>
    %cst_52 = arith.constant 0.000000e+00 : f32
    %96 = vector.broadcast %cst_52 : f32 to vector<8x256xf32>
    %97 = vector.shape_cast %36 : vector<1x256xi1> to vector<1x256xi1>
    %98 = vector.broadcast %97 : vector<1x256xi1> to vector<8x256xi1>
    %99 = arith.select %98, %95, %96 : vector<8x256xi1>, vector<8x256xf32>
    %c6 = arith.constant 6 : index
    %c0_53 = arith.constant 0 : index
    %c0_54 = arith.constant 0 : index
    %100 = vector.load %arg4[%c6, %c0_53, %c0_54] : memref<9x8x8xbf16, #tpu.memory_space<vmem>>, vector<1x8x8xbf16>
    %101 = vector.shape_cast %100 : vector<1x8x8xbf16> to vector<8x8xbf16>
    %102 = arith.truncf %99 : vector<8x256xf32> to vector<8x256xbf16>
    %cst_55 = arith.constant dense<0.000000e+00> : vector<8x256xf32>
    %103 = tpu.matmul %101, %102, %cst_55 {dimension_numbers = #tpu.dot_dimension_numbers<[1], [0], [0], [1], [0, 0, 1, 1], [], []>} : vector<8x8xbf16>, vector<8x256xbf16>, vector<8x256xf32> -> vector<8x256xf32>
    %104 = arith.addf %94, %103 : vector<8x256xf32>
    %c0_56 = arith.constant 0 : index
    %c33 = arith.constant 33 : index
    %105 = vector.load %arg7[%c0_56, %c33] : memref<8x290xf32, #tpu.memory_space<vmem>>, vector<8x256xf32>
    %c7 = arith.constant 7 : index
    %c0_57 = arith.constant 0 : index
    %c0_58 = arith.constant 0 : index
    %106 = vector.load %arg4[%c7, %c0_57, %c0_58] : memref<9x8x8xbf16, #tpu.memory_space<vmem>>, vector<1x8x8xbf16>
    %107 = vector.shape_cast %106 : vector<1x8x8xbf16> to vector<8x8xbf16>
    %108 = arith.truncf %105 : vector<8x256xf32> to vector<8x256xbf16>
    %cst_59 = arith.constant dense<0.000000e+00> : vector<8x256xf32>
    %109 = tpu.matmul %107, %108, %cst_59 {dimension_numbers = #tpu.dot_dimension_numbers<[1], [0], [0], [1], [0, 0, 1, 1], [], []>} : vector<8x8xbf16>, vector<8x256xbf16>, vector<8x256xf32> -> vector<8x256xf32>
    %110 = arith.addf %104, %109 : vector<8x256xf32>
    %c0_60 = arith.constant 0 : index
    %c34 = arith.constant 34 : index
    %111 = vector.load %arg7[%c0_60, %c34] : memref<8x290xf32, #tpu.memory_space<vmem>>, vector<8x256xf32>
    %cst_61 = arith.constant 0.000000e+00 : f32
    %112 = vector.broadcast %cst_61 : f32 to vector<8x256xf32>
    %113 = vector.shape_cast %41 : vector<1x256xi1> to vector<1x256xi1>
    %114 = vector.broadcast %113 : vector<1x256xi1> to vector<8x256xi1>
    %115 = arith.select %114, %111, %112 : vector<8x256xi1>, vector<8x256xf32>
    %c8 = arith.constant 8 : index
    %c0_62 = arith.constant 0 : index
    %c0_63 = arith.constant 0 : index
    %116 = vector.load %arg4[%c8, %c0_62, %c0_63] : memref<9x8x8xbf16, #tpu.memory_space<vmem>>, vector<1x8x8xbf16>
    %117 = vector.shape_cast %116 : vector<1x8x8xbf16> to vector<8x8xbf16>
    %118 = arith.truncf %115 : vector<8x256xf32> to vector<8x256xbf16>
    %cst_64 = arith.constant dense<0.000000e+00> : vector<8x256xf32>
    %119 = tpu.matmul %117, %118, %cst_64 {dimension_numbers = #tpu.dot_dimension_numbers<[1], [0], [0], [1], [0, 0, 1, 1], [], []>} : vector<8x8xbf16>, vector<8x256xbf16>, vector<8x256xf32> -> vector<8x256xf32>
    %120 = arith.addf %110, %119 : vector<8x256xf32>
    %c0_65 = arith.constant 0 : index
    %c0_66 = arith.constant 0 : index
    %121 = vector.load %arg5[%c0_65, %c0_66] : memref<8x1xf32, #tpu.memory_space<vmem>>, vector<8x1xf32>
    %122 = vector.broadcast %121 : vector<8x1xf32> to vector<8x256xf32>
    %123 = arith.addf %120, %122 : vector<8x256xf32>
    %c0_67 = arith.constant 0 : index
    %c0_68 = arith.constant 0 : index
    %c0_69 = arith.constant 0 : index
    %124 = vector.load %arg6[%c0_67, %c0_68, %c0_69] : memref<1x8x256xf32, #tpu.memory_space<vmem>>, vector<1x8x256xf32>
    %125 = vector.shape_cast %124 : vector<1x8x256xf32> to vector<8x256xf32>
    %126 = vector.shape_cast %123 : vector<8x256xf32> to vector<1x8x256xf32>
    tpu.vector_store %arg6[%c0_67, %c0_68, %c0_69], %126 {strides = array<i32>} : memref<1x8x256xf32, #tpu.memory_space<vmem>>, vector<1x8x256xf32>,
    return
  }
  func.func @transform_0(%arg0: i32) -> (i32, i32, i32) {
    %c0_i32 = arith.constant 0 : i32
    %c0_i32_0 = arith.constant 0 : i32
    %c0_i32_1 = arith.constant 0 : i32
    return %arg0, %c0_i32, %c0_i32_0 : i32, i32, i32
  }
  func.func @transform_1(%arg0: i32) -> (i32, i32) {
    %c0_i32 = arith.constant 0 : i32
    %c0_i32_0 = arith.constant 0 : i32
    %c0_i32_1 = arith.constant 0 : i32
    return %c0_i32, %c0_i32_0 : i32, i32
  }
  func.func @transform_2(%arg0: i32) -> (i32, i32) {
    %c0_i32 = arith.constant 0 : i32
    %c0_i32_0 = arith.constant 0 : i32
    %c0_i32_1 = arith.constant 0 : i32
    return %c0_i32, %c0_i32_0 : i32, i32
  }
  func.func @transform_3(%arg0: i32) -> (i32, i32, i32) {
    %c0_i32 = arith.constant 0 : i32
    %c0_i32_0 = arith.constant 0 : i32
    %c0_i32_1 = arith.constant 0 : i32
    %c0_i32_2 = arith.constant 0 : i32
    return %c0_i32, %c0_i32_0, %c0_i32_1 : i32, i32, i32
  }
  func.func @transform_4(%arg0: i32) -> (i32, i32) {
    %c0_i32 = arith.constant 0 : i32
    %c0_i32_0 = arith.constant 0 : i32
    %c0_i32_1 = arith.constant 0 : i32
    return %c0_i32, %c0_i32_0 : i32, i32
  }
  func.func @transform_5(%arg0: i32) -> (i32, i32, i32) {
    %c0_i32 = arith.constant 0 : i32
    %c0_i32_0 = arith.constant 0 : i32
    %c0_i32_1 = arith.constant 0 : i32
    return %arg0, %c0_i32, %c0_i32_0 : i32, i32, i32
  }
}

</mosaic_0001>

<llo_original>
// kernel: tpu_custom_call.1
$region0: #{tpu_custom_call.1}
  #allocation0 [shape = 'u32[]', space=smem, size = 0x4, offset = 0x4, fixed_abs, tag = 'smem constant byte address 0x4 - core index']
  #allocation1 [shape = 'u32[144,128]{1,0:T(1,128)}', space=vmem, size = 0x12000, scoped, tag = 'internal scratch']
  #allocation2 [shape = 'f32[8,290]{1,0:T(8,128)}', space=vmem, size = 0x3000, scoped, tag = 'scratch operand']
  %s0 = inlined_call_operand.vmem [shape: f32[2,8,256], index: 0, kind: input, shape index: {}]
  %s1 = inlined_call_operand.vmem [shape: f32[8,1], index: 1, kind: input, shape index: {}]
  %s2 = inlined_call_operand.vmem [shape: f32[8,1], index: 2, kind: input, shape index: {}]
  %s3 = inlined_call_operand.vmem [shape: bf16[9,8,8], index: 3, kind: input, shape index: {}]
  %s4 = inlined_call_operand.vmem [shape: f32[8,1], index: 4, kind: input, shape index: {}]
  %s5 = inlined_call_operand.hbm [shape: f32[2,8,256], index: 5, kind: output, shape index: {}]
  %s6 = sld [smem:[#allocation0]]
  $region53: #{tpu_custom_call.1} parent=0
    _
  %s8 = ssub.s32 1, %s6
  %s9 = scalar_select 0, %s8, %s6
  $region1: #{tpu_custom_call.1} parent=0
    #allocation3 [shape = 'u8[16384]{0}', space=vmem, size = 0x4000, scoped, tag = 'output window, operand 0']
    #allocation4 [shape = 's32[2]{0}', space=sflag, size = 0x8, scoped, tag = 'scoped memory for tpu_custom_call.1']
    %10 = vsyncpa [#allocation4], 0
    %s11 = scalar_lea.sflag [#allocation4], 1
    %12 = vsyncpa %s11, 0
    loop: start=0, step=1, limit=4
    $region2: #{tpu_custom_call.1} parent=1 // loop_pre_header
      _
    $region3: #{tpu_custom_call.1} parent=1 // loop_header
      %s14 = sphi 0, %s18
      %p15 = scmp.ge.s32.totalorder %s14, 4
      %s24 = sphi 0, %s26
      %s27 = sphi 0, %s24
      %s28 = sphi 0, %s27
      %s44 = sphi 0, %s28
      %s48 = sphi 0, %s48
      %s50 = sphi 0, %s48
      %s51 = sphi 0, %s50
      %s65 = sphi 0, %s51
      %s69 = sphi 0, %s69
      %s71 = sphi 0, %s69
      %s72 = sphi 0, %s71
      %s86 = sphi 0, %s72
      %s90 = sphi 0, %s90
      %s92 = sphi 0, %s90
      %s93 = sphi 0, %s92
      %s107 = sphi 0, %s93
      %s111 = sphi 0, %s111
      %s113 = sphi 0, %s111
      %s114 = sphi 0, %s113
      %s128 = sphi 0, %s114
      %s134 = sphi 0, %s136
      %s137 = sphi 0, %s134
      %s138 = sphi 0, %s137
      %s154 = sphi 0, %s138
    $region4: #{tpu_custom_call.1} parent=1 // loop_header_branch
      %17 = sbr.rel (%p15) target = $region8
    $region5: #{tpu_custom_call.1} parent=1 // loop_body
      %s19 = ssub.s32 %s14, 1
      %s20 = ssub.s32 %s14, 2
      %s21 = sadd.s32 %s14, 1
      %s22 = ssub.s32 %s14, %s21
      %p23 = scmp.eq.s32.totalorder %s22, 0
      %s25 = sadd.s32 %s24, 1
      %s26 = scalar_select %p23, %s24, %s25
      %p29 = pneg %p23
      %p30 = scmp.eq.s32.totalorder %s14, 1
      %p31 = por %p29, %p30
      %p32 = scmp.ne.s32.totalorder %s24, %s27
      %p33 = scmp.eq.s32.totalorder %s14, 0
      %p34 = por %p32, %p33
      %p35 = scmp.ne.s32.totalorder %s24, %s27
      %p36 = scmp.eq.s32.totalorder %s19, 1
      %p37 = por %p35, %p36
      %p38 = scmp.ne.s32.totalorder %s27, %s28
      %p39 = scmp.eq.s32.totalorder %s19, 0
      %p40 = por %p38, %p39
      %p41 = scmp.ne.s32.totalorder %s27, %s28
      %p42 = scmp.eq.s32.totalorder %s20, 1
      %p43 = por %p41, %p42
      %p45 = scmp.ne.s32.totalorder %s28, %s44
      %p46 = scmp.eq.s32.totalorder %s20, 0
      %p47 = por %p45, %p46
      %s49 = sadd.s32 %s48, 1
      %p52 = scmp.eq.s32.totalorder %s14, 1
      %p53 = scmp.ne.s32.totalorder %s48, %s50
      %p54 = scmp.eq.s32.totalorder %s14, 0
      %p55 = por %p53, %p54
      %p56 = scmp.ne.s32.totalorder %s48, %s50
      %p57 = scmp.eq.s32.totalorder %s19, 1
      %p58 = por %p56, %p57
      %p59 = scmp.ne.s32.totalorder %s50, %s51
      %p60 = scmp.eq.s32.totalorder %s19, 0
      %p61 = por %p59, %p60
      %p62 = scmp.ne.s32.totalorder %s50, %s51
      %p63 = scmp.eq.s32.totalorder %s20, 1
      %p64 = por %p62, %p63
      %p66 = scmp.ne.s32.totalorder %s51, %s65
      %p67 = scmp.eq.s32.totalorder %s20, 0
      %p68 = por %p66, %p67
      %s70 = sadd.s32 %s69, 1
      %p73 = scmp.eq.s32.totalorder %s14, 1
      %p74 = scmp.ne.s32.totalorder %s69, %s71
      %p75 = scmp.eq.s32.totalorder %s14, 0
      %p76 = por %p74, %p75
      %p77 = scmp.ne.s32.totalorder %s69, %s71
      %p78 = scmp.eq.s32.totalorder %s19, 1
      %p79 = por %p77, %p78
      %p80 = scmp.ne.s32.totalorder %s71, %s72
      %p81 = scmp.eq.s32.totalorder %s19, 0
      %p82 = por %p80, %p81
      %p83 = scmp.ne.s32.totalorder %s71, %s72
      %p84 = scmp.eq.s32.totalorder %s20, 1
      %p85 = por %p83, %p84
      %p87 = scmp.ne.s32.totalorder %s72, %s86
      %p88 = scmp.eq.s32.totalorder %s20, 0
      %p89 = por %p87, %p88
      %s91 = sadd.s32 %s90, 1
      %p94 = scmp.eq.s32.totalorder %s14, 1
      %p95 = scmp.ne.s32.totalorder %s90, %s92
      %p96 = scmp.eq.s32.totalorder %s14, 0
      %p97 = por %p95, %p96
      %p98 = scmp.ne.s32.totalorder %s90, %s92
      %p99 = scmp.eq.s32.totalorder %s19, 1
      %p100 = por %p98, %p99
      %p101 = scmp.ne.s32.totalorder %s92, %s93
      %p102 = scmp.eq.s32.totalorder %s19, 0
      %p103 = por %p101, %p102
      %p104 = scmp.ne.s32.totalorder %s92, %s93
      %p105 = scmp.eq.s32.totalorder %s20, 1
      %p106 = por %p104, %p105
      %p108 = scmp.ne.s32.totalorder %s93, %s107
      %p109 = scmp.eq.s32.totalorder %s20, 0
      %p110 = por %p108, %p109
      %s112 = sadd.s32 %s111, 1
      %p115 = scmp.eq.s32.totalorder %s14, 1
      %p116 = scmp.ne.s32.totalorder %s111, %s113
      %p117 = scmp.eq.s32.totalorder %s14, 0
      %p118 = por %p116, %p117
      %p119 = scmp.ne.s32.totalorder %s111, %s113
      %p120 = scmp.eq.s32.totalorder %s19, 1
      %p121 = por %p119, %p120
      %p122 = scmp.ne.s32.totalorder %s113, %s114
      %p123 = scmp.eq.s32.totalorder %s19, 0
      %p124 = por %p122, %p123
      %p125 = scmp.ne.s32.totalorder %s113, %s114
      %p126 = scmp.eq.s32.totalorder %s20, 1
      %p127 = por %p125, %p126
      %p129 = scmp.ne.s32.totalorder %s114, %s128
      %p130 = scmp.eq.s32.totalorder %s20, 0
      %p131 = por %p129, %p130
      %s132 = ssub.s32 %s14, %s21
      %p133 = scmp.eq.s32.totalorder %s132, 0
      %s135 = sadd.s32 %s134, 1
      %s136 = scalar_select %p133, %s134, %s135
      %p139 = pneg %p133
      %p140 = scmp.eq.s32.totalorder %s14, 1
      %p141 = por %p139, %p140
      %p142 = scmp.ne.s32.totalorder %s134, %s137
      %p143 = scmp.eq.s32.totalorder %s14, 0
      %p144 = por %p142, %p143
      %p145 = scmp.ne.s32.totalorder %s134, %s137
      %p146 = scmp.eq.s32.totalorder %s19, 1
      %p147 = por %p145, %p146
      %p148 = scmp.ne.s32.totalorder %s137, %s138
      %p149 = scmp.eq.s32.totalorder %s19, 0
      %p150 = por %p148, %p149
      %p151 = scmp.ne.s32.totalorder %s137, %s138
      %p152 = scmp.eq.s32.totalorder %s20, 1
      %p153 = por %p151, %p152
      %p155 = scmp.ne.s32.totalorder %s138, %s154
      %p156 = scmp.eq.s32.totalorder %s20, 0
      %p157 = por %p155, %p156
      %p158 = scmp.le.s32.totalorder 1, %s14
      %p159 = scmp.lt.s32.totalorder %s14, 3
      %p160 = pnand %p158, %p159
      %p161 = pneg %p160
      // Predicated region
      $region9: #{tpu_custom_call.1} parent=5 // pred_check
        _
      $region10: #{tpu_custom_call.1} parent=5 // pred_check_branch
        %163 = sbr.rel (%p160) target = $region12
      $region11: #{tpu_custom_call.1} parent=5 // pred_region
        %s164 = ssub.s32 %s14, 1
        // Predicated region
        $region13: #{tpu_custom_call.1} parent=11 // pred_check
          %p165 = pneg %p61
        $region14: #{tpu_custom_call.1} parent=11 // pred_check_branch
          %167 = sbr.rel (%p165) target = $region16
        $region15: #{tpu_custom_call.1} parent=11 // pred_region
          _
        $region16: #{tpu_custom_call.1} parent=11 // pred_fallthru
          _
        // Predicated region
        $region17: #{tpu_custom_call.1} parent=11 // pred_check
          %p168 = pneg %p82
        $region18: #{tpu_custom_call.1} parent=11 // pred_check_branch
          %170 = sbr.rel (%p168) target = $region20
        $region19: #{tpu_custom_call.1} parent=11 // pred_region
          _
        $region20: #{tpu_custom_call.1} parent=11 // pred_fallthru
          _
        // Predicated region
        $region21: #{tpu_custom_call.1} parent=11 // pred_check
          %p171 = pneg %p103
        $region22: #{tpu_custom_call.1} parent=11 // pred_check_branch
          %173 = sbr.rel (%p171) target = $region24
        $region23: #{tpu_custom_call.1} parent=11 // pred_region
          _
        $region24: #{tpu_custom_call.1} parent=11 // pred_fallthru
          _
        // Predicated region
        $region25: #{tpu_custom_call.1} parent=11 // pred_check
          %p174 = pneg %p124
        $region26: #{tpu_custom_call.1} parent=11 // pred_check_branch
          %176 = sbr.rel (%p174) target = $region28
        $region27: #{tpu_custom_call.1} parent=11 // pred_region
          _
        $region28: #{tpu_custom_call.1} parent=11 // pred_fallthru
          _
      $region12: #{tpu_custom_call.1} parent=5 // pred_fallthru
        _
      %p177 = scmp.lt.s32.totalorder %s14, 2
      // Predicated region
      $region29: #{tpu_custom_call.1} parent=5 // pred_check
        %p178 = pneg %p177
      $region30: #{tpu_custom_call.1} parent=5 // pred_check_branch
        %180 = sbr.rel (%p178) target = $region32
      $region31: #{tpu_custom_call.1} parent=5 // pred_region
        // Predicated region
        $region33: #{tpu_custom_call.1} parent=31 // pred_check
          %p181 = pneg %p34
        $region34: #{tpu_custom_call.1} parent=31 // pred_check_branch
          %183 = sbr.rel (%p181) target = $region36
        $region35: #{tpu_custom_call.1} parent=31 // pred_region
          %p184 = scmp.lt.s32.totalorder %s14, 1
          %s185 = scalar_select %p184, %s14, 1
          %s186 = smul.addr %s185, 2
          %s187 = smul.addr %s186, 8
          %s188 = scalar_lea.vmem %s0, %s187
        $region36: #{tpu_custom_call.1} parent=31 // pred_fallthru
          _
      $region32: #{tpu_custom_call.1} parent=5 // pred_fallthru
        _
      %p189 = scmp.le.s32.totalorder 1, %s14
      %p190 = scmp.lt.s32.totalorder %s14, 3
      %p191 = pnand %p189, %p190
      %p192 = pneg %p191
      // Predicated region
      $region37: #{tpu_custom_call.1} parent=5 // pred_check
        _
      $region38: #{tpu_custom_call.1} parent=5 // pred_check_branch
        %194 = sbr.rel (%p191) target = $region40
      $region39: #{tpu_custom_call.1} parent=5 // pred_region
        %s195 = ssub.s32 %s14, 1
        %p196 = scmp.lt.s32.totalorder %s19, 1
        %s197 = scalar_select %p196, %s19, 1
        %s198 = smul.addr %s197, 2
        %s199 = smul.addr %s198, 8
        %s200 = scalar_lea.vmem %s0, %s199
        %p201 = pneg %p40
        %p202 = pneg %p37
        %p203 = pneg %p61
        %p204 = pneg %p58
        %p205 = pneg %p82
        %p206 = pneg %p79
        %p207 = pneg %p103
        %p208 = pneg %p100
        %p209 = pneg %p124
        %p210 = pneg %p121
        %p211 = pneg %p150
        %p212 = pneg %p147
        %s213 = sand.u32 %s137, 1
        %s214 = scalar_lea.sflag [#allocation4], %s213
        %s215 = sand.u32 %s137, 1
        %s216 = smul.addr %s215, 16
        %s217 = scalar_lea.vmem [#allocation3], %s216
        %p218 = scmp.lt.s32.totalorder %s19, 1
        %s219 = scalar_select %p218, %s19, 1
        %s220 = smul.addr %s219, 2
        %s221 = smul.addr %s220, 8
        %s222 = scalar_lea.vmem %s0, %s221
        %v224 = vld [vmem:[%s222] sm:$0xff]
        %v225 = vld [vmem:[%s222 + $0x8] sm:$0xff]
        %v226 = vld [vmem:[%s1] sm:$0xff]
        %228 = vset.pattern.permute.xlu0 0
        %229 = vperm.xlu0 %228, %v226
        %v230 = vpop.permute.xlu0 %229
        %v232 = vmul.f32 %v224, %v230
        %v233 = vmul.f32 %v225, %v230
        %v234 = vld [vmem:[%s2] sm:$0xff]
        %236 = vset.pattern.permute.xlu0 0
        %237 = vperm.xlu0 %236, %v234
        %v238 = vpop.permute.xlu0 %237
        %v240 = vadd.f32 %v232, %v238
        %v241 = vadd.f32 %v233, %v238
        %v242 = vmax.f32 %v240, 0.0
        %v243 = vmax.f32 %v241, 0.0
        %vm244 = vcmask 138240
        %245 = vst.msk [vmem:[#allocation2] sm:$0xff] %vm244, 0.0
        %vm246 = vcmask 277640
        %247 = vst.msk [vmem:[#allocation2 + $0x10] sm:$0xff] %vm246, 0.0
        %250 = vrot.lane.b32.xlu0 %v242, 17
        %v251 = vpop.permute.xlu0 %250
        %252 = vrot.lane.b32.xlu0 %v243, 17
        %v253 = vpop.permute.xlu0 %252
        %v254 = vsel %vm244, %v251, %v253
        %vm258 = vcmask 1047688
        %259 = vst.msk [vmem:[#allocation2] sm:$0xff] %vm258, %v251
        %260 = vst [vmem:[#allocation2 + $0x8] sm:$0xff] %v254
        %261 = vst.msk [vmem:[#allocation2 + $0x10] sm:$0xff] %vm244, %v253
        %v262 = vlaneseq
        %v263 = vand.u32 %v262, 127
        %v264 = vadd.s32 %v263, 128
        %vm265 = vcmp.lt.s32.totalorder %v263, 0
        %v266 = vsub.s32 0, %v263
        %v267 = vsel %vm265, %v266, %v263
        %v268 = vshrl.u32 %v267, 4
        %v269 = vand.u32 %v267, 15
        %v270 = vsub.s32 0, %v269
        %v271 = vsel %vm265, %v270, %v269
        %vm272 = vcmp.lt.s32.totalorder %v264, 0
        %v273 = vsub.s32 0, %v264
        %v274 = vsel %vm272, %v273, %v264
        %v275 = vshrl.u32 %v274, 4
        %v276 = vand.u32 %v274, 15
        %v277 = vsub.s32 0, %v276
        %v278 = vsel %vm272, %v277, %v276
        %vm279 = vcmp.ne.s32.totalorder %v271, 0
        %vm280 = vcmp.ne.s32.totalorder %v278, 0
        %vm281 = vcmp.lt.s32.totalorder %v271, 0
        %vm282 = vcmp.lt.s32.totalorder %v278, 0
        %vm283 = vmand %vm281, %vm279
        %vm284 = vmand %vm282, %vm280
        %v285 = vadd.s32 %v271, 16
        %v286 = vadd.s32 %v278, 16
        %v287 = vsel %vm283, %v285, %v271
        %v288 = vsel %vm284, %v286, %v278
        %vm289 = vcmp.ge.s32.totalorder %v287, 1
        %vm290 = vcmp.ge.s32.totalorder %v288, 1
        %vm291 = vcmp.le.s32.totalorder %v287, 16
        %vm292 = vcmp.le.s32.totalorder %v288, 16
        %vm293 = vmand %vm289, %vm291
        %vm294 = vmand %vm290, %vm292
        %vm295 = vcmp.ge.s32.totalorder %v287, 4294967295
        %vm296 = vcmp.ge.s32.totalorder %v288, 4294967295
        %vm297 = vcmp.le.s32.totalorder %v287, 14
        %vm298 = vcmp.le.s32.totalorder %v288, 14
        %vm299 = vmand %vm295, %vm297
        %vm300 = vmand %vm296, %vm298
        %v301 = vld [vmem:[#allocation2] sm:$0xff]
        %v302 = vld [vmem:[#allocation2 + $0x8] sm:$0xff]
        %v303 = vsel %vm293, 1, 0
        %v304 = vsel %vm294, 1, 0
        %vm305 = vcmp.eq.s32.totalorder %v303, 1
        %vm306 = vcmp.eq.s32.totalorder %v304, 1
        %v307 = vsel %vm305, %v301, 0.0
        %v308 = vsel %vm306, %v302, 0.0
        %v309 = vld [vmem:[%s3] sm:$0xf]
        %v310 = vpack.c.bf16 %v307, %v307
        %v311 = vpack.c.bf16 %v308, %v308
        %v312 = vld [vmem:[#allocation2 + $0x10] sm:$0xff]
        %s313 = scalar_lea.vmem %s3, 4
        %v314 = vld [vmem:[%s313] sm:$0xf]
        %v315 = vpack.c.bf16 %v301, %v301
        %v316 = vpack.c.bf16 %v302, %v302
        %v317 = vpack.c.bf16 %v312, %v312
        %321 = vrot.lane.b32.xlu0 %v315, 127
        %v322 = vpop.permute.xlu0 %321
        %323 = vrot.lane.b32.xlu0 %v316, 127
        %v324 = vpop.permute.xlu0 %323
        %325 = vrot.lane.b32.xlu0 %v317, 127
        %v326 = vpop.permute.xlu0 %325
        %vm327 = vcmask 1039360
        %v328 = vsel %vm327, %v322, %v324
        %v329 = vsel %vm327, %v324, %v326
        %vm330 = vcmask 64512
        %v332 = vsel %vm330, %v314, 0
        %vm334 = vcmask 1043456
        %v336 = vsel %vm334, %v328, 0
        %v339 = vsel %vm334, %v329, 0
        %341 = vmatprep.subr.bf16.mxu0 %v339
        %342 = vmatpush1.bf16.msra.mxu0 %v336
        %343 = vmatprep.subr.bf16.mxu0 0
        %344 = vmatpush1.bf16.msra.mxu0 0
        %345 = vmatprep.subr.bf16.mxu0 0
        %346 = vmatpush1.bf16.msra.mxu0 0
        %347 = vmatprep.subr.bf16.mxu0 0
        %348 = vmatpush1.bf16.msra.mxu0 0
        %349 = vmatprep.subr.bf16.mxu0 0
        %350 = vmatpush1.bf16.msra.mxu0 0
        %351 = vmatprep.subr.bf16.mxu0 0
        %352 = vmatpush1.bf16.msra.mxu0 0
        %353 = vmatprep.subr.bf16.mxu0 0
        %354 = vmatpush1.bf16.msra.mxu0 0
        %355 = vmatprep.subr.bf16.mxu0 0
        %356 = vmatpush1.bf16.msra.mxu0 0
        %357 = vmatprep.subr.bf16.mxu0 0
        %358 = vmatpush1.bf16.msra.mxu0 0
        %359 = vmatprep.subr.bf16.mxu0 0
        %360 = vmatpush1.bf16.msra.mxu0 0
        %361 = vmatprep.subr.bf16.mxu0 0
        %362 = vmatpush1.bf16.msra.mxu0 0
        %363 = vmatprep.subr.bf16.mxu0 0
        %364 = vmatpush1.bf16.msra.mxu0 0
        %365 = vmatprep.subr.bf16.mxu0 0
        %366 = vmatpush1.bf16.msra.mxu0 0
        %367 = vmatprep.subr.bf16.mxu0 0
        %368 = vmatpush1.bf16.msra.mxu0 0
        %369 = vmatprep.subr.bf16.mxu0 0
        %370 = vmatpush1.bf16.msra.mxu0 0
        %371 = vmatprep.subr.bf16.mxu0 0
        %372 = vmatpush1.bf16.msra.mxu0 0
        %373 = vmatprep.mubr.bf16.mxu0 0
        %374 = vmatmul.mubr.bf16.gmra.mrb[0].mxu0 %v332
        %v375 = vpop.f32.mrb[0].mxu0
        %v376 = vadd.f32 0.0, %v375
        %v377 = vpop.f32.mrb[0].mxu0
        %v378 = vadd.f32 0.0, %v377
        %v379 = vpop.f32.mrb[0].mxu0
        %v380 = vpop.f32.mrb[0].mxu0
        %381 = vdwg.mxu0
        %v383 = vsel %vm330, %v309, 0
        %v386 = vsel %vm334, %v310, 0
        %v389 = vsel %vm334, %v311, 0
        %391 = vmatprep.subr.bf16.mxu0 %v389
        %392 = vmatpush1.bf16.msra.mxu0 %v386
        %393 = vmatprep.subr.bf16.mxu0 0
        %394 = vmatpush1.bf16.msra.mxu0 0
        %395 = vmatprep.subr.bf16.mxu0 0
        %396 = vmatpush1.bf16.msra.mxu0 0
        %397 = vmatprep.subr.bf16.mxu0 0
        %398 = vmatpush1.bf16.msra.mxu0 0
        %399 = vmatprep.subr.bf16.mxu0 0
        %400 = vmatpush1.bf16.msra.mxu0 0
        %401 = vmatprep.subr.bf16.mxu0 0
        %402 = vmatpush1.bf16.msra.mxu0 0
        %403 = vmatprep.subr.bf16.mxu0 0
        %404 = vmatpush1.bf16.msra.mxu0 0
        %405 = vmatprep.subr.bf16.mxu0 0
        %406 = vmatpush1.bf16.msra.mxu0 0
        %407 = vmatprep.subr.bf16.mxu0 0
        %408 = vmatpush1.bf16.msra.mxu0 0
        %409 = vmatprep.subr.bf16.mxu0 0
        %410 = vmatpush1.bf16.msra.mxu0 0
        %411 = vmatprep.subr.bf16.mxu0 0
        %412 = vmatpush1.bf16.msra.mxu0 0
        %413 = vmatprep.subr.bf16.mxu0 0
        %414 = vmatpush1.bf16.msra.mxu0 0
        %415 = vmatprep.subr.bf16.mxu0 0
        %416 = vmatpush1.bf16.msra.mxu0 0
        %417 = vmatprep.subr.bf16.mxu0 0
        %418 = vmatpush1.bf16.msra.mxu0 0
        %419 = vmatprep.subr.bf16.mxu0 0
        %420 = vmatpush1.bf16.msra.mxu0 0
        %421 = vmatprep.subr.bf16.mxu0 0
        %422 = vmatpush1.bf16.msra.mxu0 0
        %423 = vmatprep.mubr.bf16.mxu0 0
        %424 = vmatmul.mubr.bf16.gmra.mrb[0].mxu0 %v383
        %v425 = vpop.f32.mrb[0].mxu0
        %v426 = vadd.f32 %v376, %v425
        %v427 = vpop.f32.mrb[0].mxu0
        %v428 = vadd.f32 %v378, %v427
        %v429 = vpop.f32.mrb[0].mxu0
        %v430 = vpop.f32.mrb[0].mxu0
        %431 = vdwg.mxu0
        %v432 = vsel %vm299, 1, 0
        %v433 = vsel %vm300, 1, 0
        %vm434 = vcmp.eq.s32.totalorder %v432, 1
        %vm435 = vcmp.eq.s32.totalorder %v433, 1
        %439 = vrot.lane.b32.xlu0 %v301, 126
        %v440 = vpop.permute.xlu0 %439
        %441 = vrot.lane.b32.xlu0 %v302, 126
        %v442 = vpop.permute.xlu0 %441
        %443 = vrot.lane.b32.xlu0 %v312, 126
        %v444 = vpop.permute.xlu0 %443
        %vm445 = vcmask 1031168
        %v446 = vsel %vm445, %v440, %v442
        %v447 = vsel %vm445, %v442, %v444
        %v450 = vsel %vm434, %v446, 0.0
        %v451 = vsel %vm435, %v447, 0.0
        %s452 = scalar_lea.vmem %s3, 8
        %v453 = vld [vmem:[%s452] sm:$0xf]
        %v454 = vpack.c.bf16 %v450, %v450
        %v455 = vpack.c.bf16 %v451, %v451
        %v457 = vsel %vm330, %v453, 0
        %v460 = vsel %vm334, %v454, 0
        %v463 = vsel %vm334, %v455, 0
        %465 = vmatprep.subr.bf16.mxu0 %v463
        %466 = vmatpush1.bf16.msra.mxu0 %v460
        %467 = vmatprep.subr.bf16.mxu0 0
        %468 = vmatpush1.bf16.msra.mxu0 0
        %469 = vmatprep.subr.bf16.mxu0 0
        %470 = vmatpush1.bf16.msra.mxu0 0
        %471 = vmatprep.subr.bf16.mxu0 0
        %472 = vmatpush1.bf16.msra.mxu0 0
        %473 = vmatprep.subr.bf16.mxu0 0
        %474 = vmatpush1.bf16.msra.mxu0 0
        %475 = vmatprep.subr.bf16.mxu0 0
        %476 = vmatpush1.bf16.msra.mxu0 0
        %477 = vmatprep.subr.bf16.mxu0 0
        %478 = vmatpush1.bf16.msra.mxu0 0
        %479 = vmatprep.subr.bf16.mxu0 0
        %480 = vmatpush1.bf16.msra.mxu0 0
        %481 = vmatprep.subr.bf16.mxu0 0
        %482 = vmatpush1.bf16.msra.mxu0 0
        %483 = vmatprep.subr.bf16.mxu0 0
        %484 = vmatpush1.bf16.msra.mxu0 0
        %485 = vmatprep.subr.bf16.mxu0 0
        %486 = vmatpush1.bf16.msra.mxu0 0
        %487 = vmatprep.subr.bf16.mxu0 0
        %488 = vmatpush1.bf16.msra.mxu0 0
        %489 = vmatprep.subr.bf16.mxu0 0
        %490 = vmatpush1.bf16.msra.mxu0 0
        %491 = vmatprep.subr.bf16.mxu0 0
        %492 = vmatpush1.bf16.msra.mxu0 0
        %493 = vmatprep.subr.bf16.mxu0 0
        %494 = vmatpush1.bf16.msra.mxu0 0
        %495 = vmatprep.subr.bf16.mxu0 0
        %496 = vmatpush1.bf16.msra.mxu0 0
        %497 = vmatprep.mubr.bf16.mxu0 0
        %498 = vmatmul.mubr.bf16.gmra.mrb[0].mxu0 %v457
        %v499 = vpop.f32.mrb[0].mxu0
        %v500 = vadd.f32 0.0, %v499
        %v501 = vpop.f32.mrb[0].mxu0
        %v502 = vadd.f32 0.0, %v501
        %v503 = vpop.f32.mrb[0].mxu0
        %v504 = vpop.f32.mrb[0].mxu0
        %505 = vdwg.mxu0
        %v506 = vadd.f32 %v426, %v500
        %v507 = vadd.f32 %v428, %v502
        %508 = vrot.lane.b32.xlu0 %v301, 112
        %v509 = vpop.permute.xlu0 %508
        %510 = vrot.lane.b32.xlu0 %v302, 112
        %v511 = vpop.permute.xlu0 %510
        %512 = vrot.lane.b32.xlu0 %v312, 112
        %v513 = vpop.permute.xlu0 %512
        %vm514 = vcmask 916480
        %v515 = vsel %vm514, %v509, %v511
        %v516 = vsel %vm514, %v511, %v513
        %v519 = vsel %vm305, %v515, 0.0
        %v520 = vsel %vm306, %v516, 0.0
        %s521 = scalar_lea.vmem %s3, 12
        %v522 = vld [vmem:[%s521] sm:$0xf]
        %v523 = vpack.c.bf16 %v519, %v519
        %v524 = vpack.c.bf16 %v520, %v520
        %v526 = vsel %vm330, %v522, 0
        %v529 = vsel %vm334, %v523, 0
        %v532 = vsel %vm334, %v524, 0
        %534 = vmatprep.subr.bf16.mxu0 %v532
        %535 = vmatpush1.bf16.msra.mxu0 %v529
        %536 = vmatprep.subr.bf16.mxu0 0
        %537 = vmatpush1.bf16.msra.mxu0 0
        %538 = vmatprep.subr.bf16.mxu0 0
        %539 = vmatpush1.bf16.msra.mxu0 0
        %540 = vmatprep.subr.bf16.mxu0 0
        %541 = vmatpush1.bf16.msra.mxu0 0
        %542 = vmatprep.subr.bf16.mxu0 0
        %543 = vmatpush1.bf16.msra.mxu0 0
        %544 = vmatprep.subr.bf16.mxu0 0
        %545 = vmatpush1.bf16.msra.mxu0 0
        %546 = vmatprep.subr.bf16.mxu0 0
        %547 = vmatpush1.bf16.msra.mxu0 0
        %548 = vmatprep.subr.bf16.mxu0 0
        %549 = vmatpush1.bf16.msra.mxu0 0
        %550 = vmatprep.subr.bf16.mxu0 0
        %551 = vmatpush1.bf16.msra.mxu0 0
        %552 = vmatprep.subr.bf16.mxu0 0
        %553 = vmatpush1.bf16.msra.mxu0 0
        %554 = vmatprep.subr.bf16.mxu0 0
        %555 = vmatpush1.bf16.msra.mxu0 0
        %556 = vmatprep.subr.bf16.mxu0 0
        %557 = vmatpush1.bf16.msra.mxu0 0
        %558 = vmatprep.subr.bf16.mxu0 0
        %559 = vmatpush1.bf16.msra.mxu0 0
        %560 = vmatprep.subr.bf16.mxu0 0
        %561 = vmatpush1.bf16.msra.mxu0 0
        %562 = vmatprep.subr.bf16.mxu0 0
        %563 = vmatpush1.bf16.msra.mxu0 0
        %564 = vmatprep.subr.bf16.mxu0 0
        %565 = vmatpush1.bf16.msra.mxu0 0
        %566 = vmatprep.mubr.bf16.mxu0 0
        %567 = vmatmul.mubr.bf16.gmra.mrb[0].mxu0 %v526
        %v568 = vpop.f32.mrb[0].mxu0
        %v569 = vadd.f32 0.0, %v568
        %v570 = vpop.f32.mrb[0].mxu0
        %v571 = vadd.f32 0.0, %v570
        %v572 = vpop.f32.mrb[0].mxu0
        %v573 = vpop.f32.mrb[0].mxu0
        %574 = vdwg.mxu0
        %v575 = vadd.f32 %v506, %v569
        %v576 = vadd.f32 %v507, %v571
        %s577 = scalar_lea.vmem %s3, 16
        %v578 = vld [vmem:[%s577] sm:$0xf]
        %579 = vrot.lane.b32.xlu0 %v315, 111
        %v580 = vpop.permute.xlu0 %579
        %581 = vrot.lane.b32.xlu0 %v316, 111
        %v582 = vpop.permute.xlu0 %581
        %583 = vrot.lane.b32.xlu0 %v317, 111
        %v584 = vpop.permute.xlu0 %583
        %vm585 = vcmask 908288
        %v586 = vsel %vm585, %v580, %v582
        %v587 = vsel %vm585, %v582, %v584
        %v589 = vsel %vm330, %v578, 0
        %v592 = vsel %vm334, %v586, 0
        %v595 = vsel %vm334, %v587, 0
        %597 = vmatprep.subr.bf16.mxu0 %v595
        %598 = vmatpush1.bf16.msra.mxu0 %v592
        %599 = vmatprep.subr.bf16.mxu0 0
        %600 = vmatpush1.bf16.msra.mxu0 0
        %601 = vmatprep.subr.bf16.mxu0 0
        %602 = vmatpush1.bf16.msra.mxu0 0
        %603 = vmatprep.subr.bf16.mxu0 0
        %604 = vmatpush1.bf16.msra.mxu0 0
        %605 = vmatprep.subr.bf16.mxu0 0
        %606 = vmatpush1.bf16.msra.mxu0 0
        %607 = vmatprep.subr.bf16.mxu0 0
        %608 = vmatpush1.bf16.msra.mxu0 0
        %609 = vmatprep.subr.bf16.mxu0 0
        %610 = vmatpush1.bf16.msra.mxu0 0
        %611 = vmatprep.subr.bf16.mxu0 0
        %612 = vmatpush1.bf16.msra.mxu0 0
        %613 = vmatprep.subr.bf16.mxu0 0
        %614 = vmatpush1.bf16.msra.mxu0 0
        %615 = vmatprep.subr.bf16.mxu0 0
        %616 = vmatpush1.bf16.msra.mxu0 0
        %617 = vmatprep.subr.bf16.mxu0 0
        %618 = vmatpush1.bf16.msra.mxu0 0
        %619 = vmatprep.subr.bf16.mxu0 0
        %620 = vmatpush1.bf16.msra.mxu0 0
        %621 = vmatprep.subr.bf16.mxu0 0
        %622 = vmatpush1.bf16.msra.mxu0 0
        %623 = vmatprep.subr.bf16.mxu0 0
        %624 = vmatpush1.bf16.msra.mxu0 0
        %625 = vmatprep.subr.bf16.mxu0 0
        %626 = vmatpush1.bf16.msra.mxu0 0
        %627 = vmatprep.subr.bf16.mxu0 0
        %628 = vmatpush1.bf16.msra.mxu0 0
        %629 = vmatprep.mubr.bf16.mxu0 0
        %630 = vmatmul.mubr.bf16.gmra.mrb[0].mxu0 %v589
        %v631 = vpop.f32.mrb[0].mxu0
        %v632 = vadd.f32 0.0, %v631
        %v633 = vpop.f32.mrb[0].mxu0
        %v634 = vadd.f32 0.0, %v633
        %v635 = vpop.f32.mrb[0].mxu0
        %v636 = vpop.f32.mrb[0].mxu0
        %637 = vdwg.mxu0
        %v638 = vadd.f32 %v575, %v632
        %v639 = vadd.f32 %v576, %v634
        %640 = vrot.lane.b32.xlu0 %v301, 110
        %v641 = vpop.permute.xlu0 %640
        %642 = vrot.lane.b32.xlu0 %v302, 110
        %v643 = vpop.permute.xlu0 %642
        %644 = vrot.lane.b32.xlu0 %v312, 110
        %v645 = vpop.permute.xlu0 %644
        %vm646 = vcmask 900096
        %v647 = vsel %vm646, %v641, %v643
        %v648 = vsel %vm646, %v643, %v645
        %v651 = vsel %vm434, %v647, 0.0
        %v652 = vsel %vm435, %v648, 0.0
        %s653 = scalar_lea.vmem %s3, 20
        %v654 = vld [vmem:[%s653] sm:$0xf]
        %v655 = vpack.c.bf16 %v651, %v651
        %v656 = vpack.c.bf16 %v652, %v652
        %v658 = vsel %vm330, %v654, 0
        %v661 = vsel %vm334, %v655, 0
        %v664 = vsel %vm334, %v656, 0
        %666 = vmatprep.subr.bf16.mxu0 %v664
        %667 = vmatpush1.bf16.msra.mxu0 %v661
        %668 = vmatprep.subr.bf16.mxu0 0
        %669 = vmatpush1.bf16.msra.mxu0 0
        %670 = vmatprep.subr.bf16.mxu0 0
        %671 = vmatpush1.bf16.msra.mxu0 0
        %672 = vmatprep.subr.bf16.mxu0 0
        %673 = vmatpush1.bf16.msra.mxu0 0
        %674 = vmatprep.subr.bf16.mxu0 0
        %675 = vmatpush1.bf16.msra.mxu0 0
        %676 = vmatprep.subr.bf16.mxu0 0
        %677 = vmatpush1.bf16.msra.mxu0 0
        %678 = vmatprep.subr.bf16.mxu0 0
        %679 = vmatpush1.bf16.msra.mxu0 0
        %680 = vmatprep.subr.bf16.mxu0 0
        %681 = vmatpush1.bf16.msra.mxu0 0
        %682 = vmatprep.subr.bf16.mxu0 0
        %683 = vmatpush1.bf16.msra.mxu0 0
        %684 = vmatprep.subr.bf16.mxu0 0
        %685 = vmatpush1.bf16.msra.mxu0 0
        %686 = vmatprep.subr.bf16.mxu0 0
        %687 = vmatpush1.bf16.msra.mxu0 0
        %688 = vmatprep.subr.bf16.mxu0 0
        %689 = vmatpush1.bf16.msra.mxu0 0
        %690 = vmatprep.subr.bf16.mxu0 0
        %691 = vmatpush1.bf16.msra.mxu0 0
        %692 = vmatprep.subr.bf16.mxu0 0
        %693 = vmatpush1.bf16.msra.mxu0 0
        %694 = vmatprep.subr.bf16.mxu0 0
        %695 = vmatpush1.bf16.msra.mxu0 0
        %696 = vmatprep.subr.bf16.mxu0 0
        %697 = vmatpush1.bf16.msra.mxu0 0
        %698 = vmatprep.mubr.bf16.mxu0 0
        %699 = vmatmul.mubr.bf16.gmra.mrb[0].mxu0 %v658
        %v700 = vpop.f32.mrb[0].mxu0
        %v701 = vadd.f32 0.0, %v700
        %v702 = vpop.f32.mrb[0].mxu0
        %v703 = vadd.f32 0.0, %v702
        %v704 = vpop.f32.mrb[0].mxu0
        %v705 = vpop.f32.mrb[0].mxu0
        %706 = vdwg.mxu0
        %v707 = vadd.f32 %v638, %v701
        %v708 = vadd.f32 %v639, %v703
        %709 = vrot.lane.b32.xlu0 %v301, 96
        %v710 = vpop.permute.xlu0 %709
        %711 = vrot.lane.b32.xlu0 %v302, 96
        %v712 = vpop.permute.xlu0 %711
        %713 = vrot.lane.b32.xlu0 %v312, 96
        %v714 = vpop.permute.xlu0 %713
        %vm715 = vcmask 785408
        %v716 = vsel %vm715, %v710, %v712
        %v717 = vsel %vm715, %v712, %v714
        %v720 = vsel %vm305, %v716, 0.0
        %v721 = vsel %vm306, %v717, 0.0
        %s722 = scalar_lea.vmem %s3, 24
        %v723 = vld [vmem:[%s722] sm:$0xf]
        %v724 = vpack.c.bf16 %v720, %v720
        %v725 = vpack.c.bf16 %v721, %v721
        %v727 = vsel %vm330, %v723, 0
        %v730 = vsel %vm334, %v724, 0
        %v733 = vsel %vm334, %v725, 0
        %735 = vmatprep.subr.bf16.mxu0 %v733
        %736 = vmatpush1.bf16.msra.mxu0 %v730
        %737 = vmatprep.subr.bf16.mxu0 0
        %738 = vmatpush1.bf16.msra.mxu0 0
        %739 = vmatprep.subr.bf16.mxu0 0
        %740 = vmatpush1.bf16.msra.mxu0 0
        %741 = vmatprep.subr.bf16.mxu0 0
        %742 = vmatpush1.bf16.msra.mxu0 0
        %743 = vmatprep.subr.bf16.mxu0 0
        %744 = vmatpush1.bf16.msra.mxu0 0
        %745 = vmatprep.subr.bf16.mxu0 0
        %746 = vmatpush1.bf16.msra.mxu0 0
        %747 = vmatprep.subr.bf16.mxu0 0
        %748 = vmatpush1.bf16.msra.mxu0 0
        %749 = vmatprep.subr.bf16.mxu0 0
        %750 = vmatpush1.bf16.msra.mxu0 0
        %751 = vmatprep.subr.bf16.mxu0 0
        %752 = vmatpush1.bf16.msra.mxu0 0
        %753 = vmatprep.subr.bf16.mxu0 0
        %754 = vmatpush1.bf16.msra.mxu0 0
        %755 = vmatprep.subr.bf16.mxu0 0
        %756 = vmatpush1.bf16.msra.mxu0 0
        %757 = vmatprep.subr.bf16.mxu0 0
        %758 = vmatpush1.bf16.msra.mxu0 0
        %759 = vmatprep.subr.bf16.mxu0 0
        %760 = vmatpush1.bf16.msra.mxu0 0
        %761 = vmatprep.subr.bf16.mxu0 0
        %762 = vmatpush1.bf16.msra.mxu0 0
        %763 = vmatprep.subr.bf16.mxu0 0
        %764 = vmatpush1.bf16.msra.mxu0 0
        %765 = vmatprep.subr.bf16.mxu0 0
        %766 = vmatpush1.bf16.msra.mxu0 0
        %767 = vmatprep.mubr.bf16.mxu0 0
        %768 = vmatmul.mubr.bf16.gmra.mrb[0].mxu0 %v727
        %v769 = vpop.f32.mrb[0].mxu0
        %v770 = vadd.f32 0.0, %v769
        %v771 = vpop.f32.mrb[0].mxu0
        %v772 = vadd.f32 0.0, %v771
        %v773 = vpop.f32.mrb[0].mxu0
        %v774 = vpop.f32.mrb[0].mxu0
        %775 = vdwg.mxu0
        %v776 = vadd.f32 %v707, %v770
        %v777 = vadd.f32 %v708, %v772
        %s778 = scalar_lea.vmem %s3, 28
        %v779 = vld [vmem:[%s778] sm:$0xf]
        %780 = vrot.lane.b32.xlu0 %v315, 95
        %v781 = vpop.permute.xlu0 %780
        %782 = vrot.lane.b32.xlu0 %v316, 95
        %v783 = vpop.permute.xlu0 %782
        %784 = vrot.lane.b32.xlu0 %v317, 95
        %v785 = vpop.permute.xlu0 %784
        %vm786 = vcmask 777216
        %v787 = vsel %vm786, %v781, %v783
        %v788 = vsel %vm786, %v783, %v785
        %v790 = vsel %vm330, %v779, 0
        %v793 = vsel %vm334, %v787, 0
        %v796 = vsel %vm334, %v788, 0
        %798 = vmatprep.subr.bf16.mxu0 %v796
        %799 = vmatpush1.bf16.msra.mxu0 %v793
        %800 = vmatprep.subr.bf16.mxu0 0
        %801 = vmatpush1.bf16.msra.mxu0 0
        %802 = vmatprep.subr.bf16.mxu0 0
        %803 = vmatpush1.bf16.msra.mxu0 0
        %804 = vmatprep.subr.bf16.mxu0 0
        %805 = vmatpush1.bf16.msra.mxu0 0
        %806 = vmatprep.subr.bf16.mxu0 0
        %807 = vmatpush1.bf16.msra.mxu0 0
        %808 = vmatprep.subr.bf16.mxu0 0
        %809 = vmatpush1.bf16.msra.mxu0 0
        %810 = vmatprep.subr.bf16.mxu0 0
        %811 = vmatpush1.bf16.msra.mxu0 0
        %812 = vmatprep.subr.bf16.mxu0 0
        %813 = vmatpush1.bf16.msra.mxu0 0
        %814 = vmatprep.subr.bf16.mxu0 0
        %815 = vmatpush1.bf16.msra.mxu0 0
        %816 = vmatprep.subr.bf16.mxu0 0
        %817 = vmatpush1.bf16.msra.mxu0 0
        %818 = vmatprep.subr.bf16.mxu0 0
        %819 = vmatpush1.bf16.msra.mxu0 0
        %820 = vmatprep.subr.bf16.mxu0 0
        %821 = vmatpush1.bf16.msra.mxu0 0
        %822 = vmatprep.subr.bf16.mxu0 0
        %823 = vmatpush1.bf16.msra.mxu0 0
        %824 = vmatprep.subr.bf16.mxu0 0
        %825 = vmatpush1.bf16.msra.mxu0 0
        %826 = vmatprep.subr.bf16.mxu0 0
        %827 = vmatpush1.bf16.msra.mxu0 0
        %828 = vmatprep.subr.bf16.mxu0 0
        %829 = vmatpush1.bf16.msra.mxu0 0
        %830 = vmatprep.mubr.bf16.mxu0 0
        %831 = vmatmul.mubr.bf16.gmra.mrb[0].mxu0 %v790
        %v832 = vpop.f32.mrb[0].mxu0
        %v833 = vadd.f32 0.0, %v832
        %v834 = vpop.f32.mrb[0].mxu0
        %v835 = vadd.f32 0.0, %v834
        %v836 = vpop.f32.mrb[0].mxu0
        %v837 = vpop.f32.mrb[0].mxu0
        %838 = vdwg.mxu0
        %v839 = vadd.f32 %v776, %v833
        %v840 = vadd.f32 %v777, %v835
        %841 = vrot.lane.b32.xlu0 %v301, 94
        %v842 = vpop.permute.xlu0 %841
        %843 = vrot.lane.b32.xlu0 %v302, 94
        %v844 = vpop.permute.xlu0 %843
        %845 = vrot.lane.b32.xlu0 %v312, 94
        %v846 = vpop.permute.xlu0 %845
        %vm847 = vcmask 769024
        %v848 = vsel %vm847, %v842, %v844
        %v849 = vsel %vm847, %v844, %v846
        %v852 = vsel %vm434, %v848, 0.0
        %v853 = vsel %vm435, %v849, 0.0
        %s854 = scalar_lea.vmem %s3, 32
        %v855 = vld [vmem:[%s854] sm:$0xf]
        %v856 = vpack.c.bf16 %v852, %v852
        %v857 = vpack.c.bf16 %v853, %v853
        %v859 = vsel %vm330, %v855, 0
        %v862 = vsel %vm334, %v856, 0
        %v865 = vsel %vm334, %v857, 0
        %867 = vmatprep.subr.bf16.mxu0 %v865
        %868 = vmatpush1.bf16.msra.mxu0 %v862
        %869 = vmatprep.subr.bf16.mxu0 0
        %870 = vmatpush1.bf16.msra.mxu0 0
        %871 = vmatprep.subr.bf16.mxu0 0
        %872 = vmatpush1.bf16.msra.mxu0 0
        %873 = vmatprep.subr.bf16.mxu0 0
        %874 = vmatpush1.bf16.msra.mxu0 0
        %875 = vmatprep.subr.bf16.mxu0 0
        %876 = vmatpush1.bf16.msra.mxu0 0
        %877 = vmatprep.subr.bf16.mxu0 0
        %878 = vmatpush1.bf16.msra.mxu0 0
        %879 = vmatprep.subr.bf16.mxu0 0
        %880 = vmatpush1.bf16.msra.mxu0 0
        %881 = vmatprep.subr.bf16.mxu0 0
        %882 = vmatpush1.bf16.msra.mxu0 0
        %883 = vmatprep.subr.bf16.mxu0 0
        %884 = vmatpush1.bf16.msra.mxu0 0
        %885 = vmatprep.subr.bf16.mxu0 0
        %886 = vmatpush1.bf16.msra.mxu0 0
        %887 = vmatprep.subr.bf16.mxu0 0
        %888 = vmatpush1.bf16.msra.mxu0 0
        %889 = vmatprep.subr.bf16.mxu0 0
        %890 = vmatpush1.bf16.msra.mxu0 0
        %891 = vmatprep.subr.bf16.mxu0 0
        %892 = vmatpush1.bf16.msra.mxu0 0
        %893 = vmatprep.subr.bf16.mxu0 0
        %894 = vmatpush1.bf16.msra.mxu0 0
        %895 = vmatprep.subr.bf16.mxu0 0
        %896 = vmatpush1.bf16.msra.mxu0 0
        %897 = vmatprep.subr.bf16.mxu0 0
        %898 = vmatpush1.bf16.msra.mxu0 0
        %899 = vmatprep.mubr.bf16.mxu0 0
        %900 = vmatmul.mubr.bf16.gmra.mrb[0].mxu0 %v859
        %v901 = vpop.f32.mrb[0].mxu0
        %v902 = vadd.f32 0.0, %v901
        %v903 = vpop.f32.mrb[0].mxu0
        %v904 = vadd.f32 0.0, %v903
        %v905 = vpop.f32.mrb[0].mxu0
        %v906 = vpop.f32.mrb[0].mxu0
        %907 = vdwg.mxu0
        %v908 = vadd.f32 %v839, %v902
        %v909 = vadd.f32 %v840, %v904
        %v910 = vld [vmem:[%s4] sm:$0xff]
        %912 = vset.pattern.permute.xlu0 0
        %913 = vperm.xlu0 %912, %v910
        %v914 = vpop.permute.xlu0 %913
        %v916 = vadd.f32 %v908, %v914
        %v917 = vadd.f32 %v909, %v914
        %918 = vst [vmem:[%s217] sm:$0xff] %v916
        %919 = vst [vmem:[%s217 + $0x8] sm:$0xff] %v917
        %s920 = sand.u32 %s137, 1
        %s921 = scalar_lea.sflag [#allocation4], %s920
        %s922 = sand.u32 %s137, 1
        %s923 = smul.addr %s922, 16
        %s924 = scalar_lea.vmem [#allocation3], %s923
        // Predicated region
        $region41: #{tpu_custom_call.1} parent=39 // pred_check
          %p925 = pneg %p147
        $region42: #{tpu_custom_call.1} parent=39 // pred_check_branch
          %927 = sbr.rel (%p925) target = $region44
        $region43: #{tpu_custom_call.1} parent=39 // pred_region
          %s929 = ssub.s32 256, 256
          %930 = vsyncadd %s921, %s929
          %s931 = smul.addr %s19, 2
          %s932 = smul.addr %s931, 128
          %s933 = scalar_lea.hbm %s5, %s932
          %s935 = sshll.u32 %s924, 4
          %s936 = int_to_ptr.vmem [resolvable:$true] %s935
          %938 = dma.vmem_to_hbm [thread:$0]  %s936, 256, %s933, %s921
        $region44: #{tpu_custom_call.1} parent=39 // pred_fallthru
          _
      $region40: #{tpu_custom_call.1} parent=5 // pred_fallthru
        _
      %p939 = scmp.le.s32.totalorder 2, %s14
      // Predicated region
      $region45: #{tpu_custom_call.1} parent=5 // pred_check
        %p940 = pneg %p939
      $region46: #{tpu_custom_call.1} parent=5 // pred_check_branch
        %942 = sbr.rel (%p940) target = $region48
      $region47: #{tpu_custom_call.1} parent=5 // pred_region
        %s943 = ssub.s32 %s14, 2
        // Predicated region
        $region49: #{tpu_custom_call.1} parent=47 // pred_check
          %p944 = pneg %p153
        $region50: #{tpu_custom_call.1} parent=47 // pred_check_branch
          %946 = sbr.rel (%p944) target = $region52
        $region51: #{tpu_custom_call.1} parent=47 // pred_region
          %s947 = sand.u32 %s138, 1
          %s948 = scalar_lea.sflag [#allocation4], %s947
          %s949 = sand.u32 %s138, 1
          %s950 = smul.addr %s949, 16
          %s951 = scalar_lea.vmem [#allocation3], %s950
          %952 = dma.done %s948, 256
        $region52: #{tpu_custom_call.1} parent=47 // pred_fallthru
          _
      $region48: #{tpu_custom_call.1} parent=5 // pred_fallthru
        _
    $region6: #{tpu_custom_call.1} parent=1 // loop_footer
      %s18 = sadd.s32 1, %s14
    $region7: #{tpu_custom_call.1} parent=1 // loop_footer_branch
      %13 = sbr.rel target = $region3
    $region8: #{tpu_custom_call.1} parent=1 // loop_exit
      _
    %953 = vsyncpa [#allocation4], 1
    %s954 = scalar_lea.sflag [#allocation4], 1
    %955 = vsyncpa %s954, 1

</llo_original>
